<compile_context>
chip_gen: v6e
topology: v6e:2x2x1
jax: 0.10.0
libtpu: 0.0.40
codegen_flags: <defaults>
</compile_context>

<pallas_src>
import jax
import jax.numpy as jnp
from jax.experimental import pallas as pl
from jax.experimental.pallas import tpu as pltpu


def _round_up(v, m):
    return ((v + m - 1) // m) * m


# ---------------------------------------------------------------------------
# Kernels
# ---------------------------------------------------------------------------
def _mlp_kernel_single(x_ref, w1_ref, b1_ref, w2_ref, b2_ref, o_ref):
    """Fast path: whole reduction in one step, no hidden split."""
    h = jnp.maximum(
        jnp.dot(x_ref[...], w1_ref[...], preferred_element_type=jnp.float32)
        + b1_ref[...], 0.0)
    logits = jnp.dot(h.astype(w2_ref.dtype), w2_ref[...],
                     preferred_element_type=jnp.float32)
    o_ref[...] = (logits + b2_ref[...]).astype(o_ref.dtype)


def _mlp_kernel(x_ref, w1_ref, b1_ref, w2_ref, o_ref, acc_ref):
    """General path: grid = (batch tiles, hidden tiles, reduction tiles)."""
    k = pl.program_id(2)

    # Fold bias-1 into the accumulator init (no separate VPU pass later).
    @pl.when(k == 0)
    def _():
        acc_ref[...] = jnp.broadcast_to(b1_ref[...], acc_ref.shape)

    # Featurizer partial matmul over this K tile (MXU, f32 accumulation).
    acc_ref[...] += jnp.dot(x_ref[...], w1_ref[...],
                            preferred_element_type=jnp.float32)

    # Finalize on the last reduction step: ReLU -> classifier partial logits.
    @pl.when(k == pl.num_programs(2) - 1)
    def _():
        h = jnp.maximum(acc_ref[...], 0.0)
        o_ref[...] = jnp.dot(h.astype(w2_ref.dtype), w2_ref[...],
                             preferred_element_type=jnp.float32
                             ).astype(o_ref.dtype)


# ---------------------------------------------------------------------------
# One-time parameter preparation (model-load time, NOT the per-call hot path)
# ---------------------------------------------------------------------------
def prepare_params(w1, b1, w2, b2, *, dtype=jnp.bfloat16, max_batch_tile=256,
                   tk_max=4096, hidden_split=1):
    """Pad + cast the static weights once and pick the tiling plan."""
    D, Hdim = w1.shape
    num_classes = w2.shape[1]
    Np = _round_up(num_classes, 128)     # lane-dense classifier/output columns

    # Hidden tiling.  hidden_split > 1 adds a "parallel" grid axis over W1
    # columns (v7x: the two TensorCores then split the W1 HBM stream).
    if hidden_split > 1 and Hdim % (hidden_split * 128) == 0:
        TH = Hdim // hidden_split
    else:
        TH = Hdim                        # full-extent block; no HBM padding
    n_j = Hdim // TH

    # Generation-aware VMEM budget (~48 MiB on v7x, ~96 MiB on v5e/v6e).
    try:
        cap = int(getattr(pltpu.get_tpu_info(), "vmem_capacity_bytes", 0)) \
            or (64 << 20)
    except Exception:
        cap = 64 << 20
    budget = (cap * 3) // 4

    in_bytes = jnp.dtype(dtype).itemsize
    Dp128 = _round_up(max(D, 128), 128)
    TK = min(_round_up(tk_max, 128), Dp128)

    def working_set(tk):
        return (2 * max_batch_tile * tk * in_bytes     # x tiles (double-buffered)
                + 2 * tk * TH * in_bytes               # W1 tiles (double-buffered)
                + max_batch_tile * TH * 4              # f32 accumulator
                + 2 * TH * Np * in_bytes               # W2 (VMEM resident)
                + 2 * max_batch_tile * Np * 4          # output tiles
                + 4 * (TH + Np))                       # biases

    while TK > 128 and working_set(TK) > budget:
        TK -= 128
    Dp = _round_up(D, TK)

    return {
        "w1": jnp.pad(w1, ((0, Dp - D), (0, 0))).astype(dtype),
        "b1": b1.reshape(1, Hdim).astype(jnp.float32),
        "w2": jnp.pad(w2, ((0, 0), (0, Np - num_classes))).astype(dtype),
        "b2": jnp.pad(b2.reshape(1, -1),
                      ((0, 0), (0, Np - num_classes))).astype(jnp.float32),
        "D": D, "Dp": Dp, "TK": TK,
        "Hdim": Hdim, "TH": TH, "n_j": n_j,
        "num_classes": num_classes, "Np": Np,
        "dtype": dtype, "max_batch_tile": max_batch_tile,
        "vmem_limit": int(budget),
    }


# ---------------------------------------------------------------------------
# Per-call forward: forward(x) = predict(x)
# ---------------------------------------------------------------------------
def algorithm_predict(x, params):
    p = params
    B = x.shape[0]
    x_flat = x.reshape(B, -1)            # flatten NCHW row-major
    if x_flat.shape[1] != p["D"]:
        raise ValueError("input feature size mismatch")

    D, Dp, TK = p["D"], p["Dp"], p["TK"]
    Hdim, TH, n_j = p["Hdim"], p["TH"], p["n_j"]
    Np, num_classes = p["Np"], p["num_classes"]
    in_bytes = jnp.dtype(p["dtype"]).itemsize

    TM = min(_round_up(B, 16), p["max_batch_tile"])   # 16: bf16 sublane packing
    Bp = _round_up(B, TM)
    n_i = Bp // TM
    n_k = Dp // TK

    # Only the activations are padded/cast per call.
    x_p = jnp.pad(x_flat.astype(p["dtype"]), ((0, Bp - B), (0, Dp - D)))

    if n_k == 1 and n_j == 1:
        # Tiny/fast path: straight-line single-step kernel.
        cost = pl.CostEstimate(
            flops=2 * Bp * Dp * Hdim + 2 * Bp * Hdim * Np,
            transcendentals=0,
            bytes_accessed=in_bytes * (Bp * Dp + Dp * Hdim + Hdim * Np)
                           + 4 * (Hdim + Np + Bp * Np))
        logits = pl.pallas_call(
            _mlp_kernel_single,
            out_shape=jax.ShapeDtypeStruct((Bp, Np), jnp.float32),
            grid=(n_i,),
            in_specs=[
                pl.BlockSpec((TM, Dp), lambda i: (i, 0)),     # activations
                pl.BlockSpec((Dp, Hdim), lambda i: (0, 0)),   # W1 (resident)
                pl.BlockSpec((1, Hdim), lambda i: (0, 0)),    # b1
                pl.BlockSpec((Hdim, Np), lambda i: (0, 0)),   # W2
                pl.BlockSpec((1, Np), lambda i: (0, 0)),      # b2
            ],
            out_specs=pl.BlockSpec((TM, Np), lambda i: (i, 0)),
            compiler_params=pltpu.CompilerParams(
                dimension_semantics=("parallel",),
                vmem_limit_bytes=p["vmem_limit"]),
            cost_estimate=cost,
        )(x_p, p["w1"], p["b1"], p["w2"], p["b2"])
    else:
        # General path: stream W1 over K, optional parallel hidden split.
        cost = pl.CostEstimate(
            flops=2 * Bp * Dp * Hdim + 2 * Bp * Hdim * Np,
            transcendentals=0,
            bytes_accessed=in_bytes * (n_j * Bp * Dp + n_i * Dp * Hdim
                                       + n_i * n_j * Hdim * Np)
                           + 4 * (Hdim + Np + n_j * Bp * Np))
        partial = pl.pallas_call(
            _mlp_kernel,
            out_shape=jax.ShapeDtypeStruct((n_j, Bp, Np), jnp.float32),
            grid=(n_i, n_j, n_k),
            in_specs=[
                pl.BlockSpec((TM, TK), lambda i, j, k: (i, k)),   # activations
                pl.BlockSpec((TK, TH), lambda i, j, k: (k, j)),   # W1 (streamed)
                pl.BlockSpec((1, TH), lambda i, j, k: (0, j)),    # b1
                pl.BlockSpec((TH, Np), lambda i, j, k: (j, 0)),   # W2 (resident)
            ],
            out_specs=pl.BlockSpec((None, TM, Np),
                                   lambda i, j, k: (j, i, 0)),
            scratch_shapes=[pltpu.VMEM((TM, TH), jnp.float32)],
            compiler_params=pltpu.CompilerParams(
                dimension_semantics=("parallel", "parallel", "arbitrary"),
                vmem_limit_bytes=p["vmem_limit"]),
            cost_estimate=cost,
        )(x_p, p["w1"], p["b1"], p["w2"])
        # Sum the hidden-split partial logits and add bias-2 (tiny f32 op).
        logits = partial.sum(axis=0) + p["b2"]

    # Slice padded rows/lanes away so padded logits never leak downstream.
    return logits[:B, :num_classes]


# ---------------------------------------------------------------------------
# Self-test
# ---------------------------------------------------------------------------
if __name__ == "__main__":
    key = jax.random.PRNGKey(0)

    def init_params(k, D, hidden, num_classes):
        kw1, kb1, kw2, kb2 = jax.random.split(k, 4)
        w1 = jax.random.normal(kw1, (D, hidden), jnp.float32) / jnp.sqrt(D)
        b1 = jax.random.normal(kb1, (hidden,), jnp.float32) * 0.01
        w2 = jax.random.normal(kw2, (hidden, num_classes), jnp.float32) / jnp.sqrt(hidden)
        b2 = jax.random.normal(kb2, (num_classes,), jnp.float32) * 0.01
        return w1, b1, w2, b2

    def bf16_ref(x_flat, w1, b1, w2, b2):
        # bf16-streaming / f32-accumulation reference (matches kernel numerics).
        h = jnp.maximum(
            jnp.dot(x_flat.astype(jnp.bfloat16), w1.astype(jnp.bfloat16),
                    preferred_element_type=jnp.float32) + b1, 0.0)
        return jnp.dot(h.astype(jnp.bfloat16), w2.astype(jnp.bfloat16),
                       preferred_element_type=jnp.float32) + b2

    # --- test 1: module-scale shapes (B=2, input_shape=(4,16,16), classes=8,
    #             hidden=32) -> single-step fast path -----------------------
    B, C, Hh, Ww = 2, 4, 16, 16
    num_classes, hidden = 8, 32
    D = C * Hh * Ww
    k1, k2, key = jax.random.split(key, 3)
    x = jax.random.normal(k1, (B, C, Hh, Ww), jnp.float32)
    w1, b1, w2, b2 = init_params(k2, D, hidden, num_classes)

    params = prepare_params(w1, b1, w2, b2)          # one-time, model-load path
    logits = algorithm_predict(x, params)
    jax.block_until_ready(logits)

    ref = bf16_ref(x.reshape(B, -1), w1, b1, w2, b2)
    assert logits.shape == (B, num_classes)
    assert jnp.allclose(logits, ref, atol=1e-2, rtol=1e-2), \
        float(jnp.max(jnp.abs(logits - ref)))

    # --- test 2: exercise the streamed / hidden-split path (grid = (1,2,4)) -
    B2, hidden2, classes2 = 32, 256, 10
    k3, k4 = jax.random.split(key, 2)
    x2 = jax.random.normal(k3, (B2, 2, 64, 64), jnp.float32)     # D2 = 8192
    D2 = 2 * 64 * 64
    w1b, b1b, w2b, b2b = init_params(k4, D2, hidden2, classes2)
    params2 = prepare_params(w1b, b1b, w2b, b2b, tk_max=2048, hidden_split=2)
    logits2 = algorithm_predict(x2, params2)
    jax.block_until_ready(logits2)

    ref2 = bf16_ref(x2.reshape(B2, -1), w1b, b1b, w2b, b2b)
    assert logits2.shape == (B2, classes2)
    assert jnp.allclose(logits2, ref2, atol=1e-2, rtol=1e-2), \
        float(jnp.max(jnp.abs(logits2 - ref2)))

    print("KERNEL_OK")
</pallas_src>

<mosaic_0001>
module attributes {stable_mosaic.version = 11 : i64} {
  func.func @_mlp_kernel_single(%arg0: i32, %arg1: memref<16x1024xbf16, #tpu.memory_space<vmem>>, %arg2: memref<1024x32xbf16, #tpu.memory_space<vmem>>, %arg3: memref<1x32xf32, #tpu.memory_space<vmem>>, %arg4: memref<32x128xbf16, #tpu.memory_space<vmem>>, %arg5: memref<1x128xf32, #tpu.memory_space<vmem>>, %arg6: memref<16x128xf32, #tpu.memory_space<vmem>>) attributes {dimension_semantics = [#tpu.dimension_semantics<parallel>], iteration_bounds = array<i64: 1>, scalar_prefetch = 0 : i64, scratch_operands = 0 : i64, tpu.core_type = #tpu.core_type<tc>, window_params = [{transform_indices = @transform_0, window_bounds = array<i64: 16, 1024>}, {pipeline_mode = #tpu.pipeline_mode<synchronous>, transform_indices = @transform_1, window_bounds = array<i64: 1024, 32>}, {pipeline_mode = #tpu.pipeline_mode<synchronous>, transform_indices = @transform_2, window_bounds = array<i64: 1, 32>}, {pipeline_mode = #tpu.pipeline_mode<synchronous>, transform_indices = @transform_3, window_bounds = array<i64: 32, 128>}, {pipeline_mode = #tpu.pipeline_mode<synchronous>, transform_indices = @transform_4, window_bounds = array<i64: 1, 128>}, {transform_indices = @transform_5, window_bounds = array<i64: 16, 128>}]} {
    %c0 = arith.constant 0 : index
    %c0_0 = arith.constant 0 : index
    %0 = vector.load %arg1[%c0, %c0_0] : memref<16x1024xbf16, #tpu.memory_space<vmem>>, vector<16x1024xbf16>
    %c0_1 = arith.constant 0 : index
    %c0_2 = arith.constant 0 : index
    %1 = vector.load %arg2[%c0_1, %c0_2] : memref<1024x32xbf16, #tpu.memory_space<vmem>>, vector<1024x32xbf16>
    %cst = arith.constant dense<0.000000e+00> : vector<16x32xf32>
    %2 = tpu.matmul %0, %1, %cst {dimension_numbers = #tpu.dot_dimension_numbers<[1], [0], [0], [1], [0, 0, 1, 1], [], []>} : vector<16x1024xbf16>, vector<1024x32xbf16>, vector<16x32xf32> -> vector<16x32xf32>
    %c0_3 = arith.constant 0 : index
    %c0_4 = arith.constant 0 : index
    %3 = vector.load %arg3[%c0_3, %c0_4] : memref<1x32xf32, #tpu.memory_space<vmem>>, vector<1x32xf32>
    %4 = vector.broadcast %3 : vector<1x32xf32> to vector<16x32xf32>
    %5 = arith.addf %2, %4 : vector<16x32xf32>
    %cst_5 = arith.constant 0.000000e+00 : f32
    %6 = vector.broadcast %cst_5 : f32 to vector<16x32xf32>
    %7 = arith.maximumf %5, %6 : vector<16x32xf32>
    %8 = arith.truncf %7 : vector<16x32xf32> to vector<16x32xbf16>
    %c0_6 = arith.constant 0 : index
    %c0_7 = arith.constant 0 : index
    %9 = vector.load %arg4[%c0_6, %c0_7] : memref<32x128xbf16, #tpu.memory_space<vmem>>, vector<32x128xbf16>
    %cst_8 = arith.constant dense<0.000000e+00> : vector<16x128xf32>
    %10 = tpu.matmul %8, %9, %cst_8 {dimension_numbers = #tpu.dot_dimension_numbers<[1], [0], [0], [1], [0, 0, 1, 1], [], []>} : vector<16x32xbf16>, vector<32x128xbf16>, vector<16x128xf32> -> vector<16x128xf32>
    %c0_9 = arith.constant 0 : index
    %c0_10 = arith.constant 0 : index
    %11 = vector.load %arg5[%c0_9, %c0_10] : memref<1x128xf32, #tpu.memory_space<vmem>>, vector<1x128xf32>
    %12 = vector.broadcast %11 : vector<1x128xf32> to vector<16x128xf32>
    %13 = arith.addf %10, %12 : vector<16x128xf32>
    %c0_11 = arith.constant 0 : index
    %c0_12 = arith.constant 0 : index
    %14 = vector.load %arg6[%c0_11, %c0_12] : memref<16x128xf32, #tpu.memory_space<vmem>>, vector<16x128xf32>
    tpu.vector_store %arg6[%c0_11, %c0_12], %13 {strides = array<i32>} : memref<16x128xf32, #tpu.memory_space<vmem>>, vector<16x128xf32>,
    return
  }
  func.func @transform_0(%arg0: i32) -> (i32, i32) {
    %c0_i32 = arith.constant 0 : i32
    %c0_i32_0 = arith.constant 0 : i32
    return %arg0, %c0_i32 : i32, i32
  }
  func.func @transform_1(%arg0: i32) -> (i32, i32) {
    %c0_i32 = arith.constant 0 : i32
    %c0_i32_0 = arith.constant 0 : i32
    %c0_i32_1 = arith.constant 0 : i32
    return %c0_i32, %c0_i32_0 : i32, i32
  }
  func.func @transform_2(%arg0: i32) -> (i32, i32) {
    %c0_i32 = arith.constant 0 : i32
    %c0_i32_0 = arith.constant 0 : i32
    %c0_i32_1 = arith.constant 0 : i32
    return %c0_i32, %c0_i32_0 : i32, i32
  }
  func.func @transform_3(%arg0: i32) -> (i32, i32) {
    %c0_i32 = arith.constant 0 : i32
    %c0_i32_0 = arith.constant 0 : i32
    %c0_i32_1 = arith.constant 0 : i32
    return %c0_i32, %c0_i32_0 : i32, i32
  }
  func.func @transform_4(%arg0: i32) -> (i32, i32) {
    %c0_i32 = arith.constant 0 : i32
    %c0_i32_0 = arith.constant 0 : i32
    %c0_i32_1 = arith.constant 0 : i32
    return %c0_i32, %c0_i32_0 : i32, i32
  }
  func.func @transform_5(%arg0: i32) -> (i32, i32) {
    %c0_i32 = arith.constant 0 : i32
    %c0_i32_0 = arith.constant 0 : i32
    return %arg0, %c0_i32 : i32, i32
  }
}

</mosaic_0001>

<llo_original>
// kernel: tpu_custom_call.1
$region0: #{tpu_custom_call.1}
  #allocation0 [shape = 'u32[]', space=smem, size = 0x4, offset = 0x4, fixed_abs, tag = 'smem constant byte address 0x4 - core index']
  #allocation1 [shape = 'u32[144,128]{1,0:T(1,128)}', space=vmem, size = 0x12000, scoped, tag = 'internal scratch']
  %s0 = inlined_call_operand.vmem [shape: bf16[16,1024], index: 0, kind: input, shape index: {}]
  %s1 = inlined_call_operand.vmem [shape: bf16[1024,32], index: 1, kind: input, shape index: {}]
  %s2 = inlined_call_operand.vmem [shape: f32[1,32], index: 2, kind: input, shape index: {}]
  %s3 = inlined_call_operand.vmem [shape: bf16[32,128], index: 3, kind: input, shape index: {}]
  %s4 = inlined_call_operand.vmem [shape: f32[1,128], index: 4, kind: input, shape index: {}]
  %s5 = inlined_call_operand.hbm [shape: f32[16,128], index: 5, kind: output, shape index: {}]
  %s6 = sld [smem:[#allocation0]]
  $region30: #{tpu_custom_call.1} parent=0
    _
  %s8 = ssub.s32 1, %s6
  %s9 = scalar_select 0, %s8, %s6
  $region1: #{tpu_custom_call.1} parent=0
    #allocation2 [shape = 'u8[8192]{0}', space=vmem, size = 0x2000, scoped, tag = 'output window, operand 0, single buffered']
    #allocation3 [shape = 's32[1]{0}', space=sflag, size = 0x4, scoped, tag = 'scoped memory for tpu_custom_call.1']
    %10 = vsyncpa [#allocation3], 0
    // Predicated region
    $region2: #{tpu_custom_call.1} parent=1 // pred_check
      _
    $region3: #{tpu_custom_call.1} parent=1 // pred_check_branch
      %12 = sbr.rel (0) target = $region5
    $region4: #{tpu_custom_call.1} parent=1 // pred_region
      _
    $region5: #{tpu_custom_call.1} parent=1 // pred_fallthru
      _
    // Predicated region
    $region6: #{tpu_custom_call.1} parent=1 // pred_check
      _
    $region7: #{tpu_custom_call.1} parent=1 // pred_check_branch
      %14 = sbr.rel (0) target = $region9
    $region8: #{tpu_custom_call.1} parent=1 // pred_region
      _
    $region9: #{tpu_custom_call.1} parent=1 // pred_fallthru
      _
    // Predicated region
    $region10: #{tpu_custom_call.1} parent=1 // pred_check
      _
    $region11: #{tpu_custom_call.1} parent=1 // pred_check_branch
      %16 = sbr.rel (0) target = $region13
    $region12: #{tpu_custom_call.1} parent=1 // pred_region
      _
    $region13: #{tpu_custom_call.1} parent=1 // pred_fallthru
      _
    // Predicated region
    $region14: #{tpu_custom_call.1} parent=1 // pred_check
      _
    $region15: #{tpu_custom_call.1} parent=1 // pred_check_branch
      %18 = sbr.rel (0) target = $region17
    $region16: #{tpu_custom_call.1} parent=1 // pred_region
      _
    $region17: #{tpu_custom_call.1} parent=1 // pred_fallthru
      _
    // Predicated region
    $region18: #{tpu_custom_call.1} parent=1 // pred_check
      _
    $region19: #{tpu_custom_call.1} parent=1 // pred_check_branch
      %20 = sbr.rel (0) target = $region21
    $region20: #{tpu_custom_call.1} parent=1 // pred_region
      _
    $region21: #{tpu_custom_call.1} parent=1 // pred_fallthru
      _
    %v22 = vld [vmem:[%s0] sm:$0xff]
    %v23 = vld [vmem:[%s0 + $0x8] sm:$0xff]
    %v24 = vld [vmem:[%s0 + $0x10] sm:$0xff]
    %v25 = vld [vmem:[%s0 + $0x18] sm:$0xff]
    %v26 = vld [vmem:[%s0 + $0x20] sm:$0xff]
    %v27 = vld [vmem:[%s0 + $0x28] sm:$0xff]
    %v28 = vld [vmem:[%s0 + $0x30] sm:$0xff]
    %v29 = vld [vmem:[%s0 + $0x38] sm:$0xff]
    %v30 = vld [vmem:[%s1] sm:$0xf]
    %v31 = vld [vmem:[%s1 + $0x4] sm:$0xf]
    %v32 = vld [vmem:[%s1 + $0x8] sm:$0xf]
    %v33 = vld [vmem:[%s1 + $0xc] sm:$0xf]
    %v34 = vld [vmem:[%s1 + $0x10] sm:$0xf]
    %v35 = vld [vmem:[%s1 + $0x14] sm:$0xf]
    %v36 = vld [vmem:[%s1 + $0x18] sm:$0xf]
    %v37 = vld [vmem:[%s1 + $0x1c] sm:$0xf]
    %v38 = vld [vmem:[%s1 + $0x20] sm:$0xf]
    %v39 = vld [vmem:[%s1 + $0x24] sm:$0xf]
    %v40 = vld [vmem:[%s1 + $0x28] sm:$0xf]
    %v41 = vld [vmem:[%s1 + $0x2c] sm:$0xf]
    %v42 = vld [vmem:[%s1 + $0x30] sm:$0xf]
    %v43 = vld [vmem:[%s1 + $0x34] sm:$0xf]
    %v44 = vld [vmem:[%s1 + $0x38] sm:$0xf]
    %v45 = vld [vmem:[%s1 + $0x3c] sm:$0xf]
    %v46 = vld [vmem:[%s1 + $0x40] sm:$0xf]
    %v47 = vld [vmem:[%s1 + $0x44] sm:$0xf]
    %v48 = vld [vmem:[%s1 + $0x48] sm:$0xf]
    %v49 = vld [vmem:[%s1 + $0x4c] sm:$0xf]
    %v50 = vld [vmem:[%s1 + $0x50] sm:$0xf]
    %v51 = vld [vmem:[%s1 + $0x54] sm:$0xf]
    %v52 = vld [vmem:[%s1 + $0x58] sm:$0xf]
    %v53 = vld [vmem:[%s1 + $0x5c] sm:$0xf]
    %v54 = vld [vmem:[%s1 + $0x60] sm:$0xf]
    %v55 = vld [vmem:[%s1 + $0x64] sm:$0xf]
    %v56 = vld [vmem:[%s1 + $0x68] sm:$0xf]
    %v57 = vld [vmem:[%s1 + $0x6c] sm:$0xf]
    %v58 = vld [vmem:[%s1 + $0x70] sm:$0xf]
    %v59 = vld [vmem:[%s1 + $0x74] sm:$0xf]
    %v60 = vld [vmem:[%s1 + $0x78] sm:$0xf]
    %v61 = vld [vmem:[%s1 + $0x7c] sm:$0xf]
    %v62 = vld [vmem:[%s1 + $0x80] sm:$0xf]
    %v63 = vld [vmem:[%s1 + $0x84] sm:$0xf]
    %v64 = vld [vmem:[%s1 + $0x88] sm:$0xf]
    %v65 = vld [vmem:[%s1 + $0x8c] sm:$0xf]
    %v66 = vld [vmem:[%s1 + $0x90] sm:$0xf]
    %v67 = vld [vmem:[%s1 + $0x94] sm:$0xf]
    %v68 = vld [vmem:[%s1 + $0x98] sm:$0xf]
    %v69 = vld [vmem:[%s1 + $0x9c] sm:$0xf]
    %v70 = vld [vmem:[%s1 + $0xa0] sm:$0xf]
    %v71 = vld [vmem:[%s1 + $0xa4] sm:$0xf]
    %v72 = vld [vmem:[%s1 + $0xa8] sm:$0xf]
    %v73 = vld [vmem:[%s1 + $0xac] sm:$0xf]
    %v74 = vld [vmem:[%s1 + $0xb0] sm:$0xf]
    %v75 = vld [vmem:[%s1 + $0xb4] sm:$0xf]
    %v76 = vld [vmem:[%s1 + $0xb8] sm:$0xf]
    %v77 = vld [vmem:[%s1 + $0xbc] sm:$0xf]
    %v78 = vld [vmem:[%s1 + $0xc0] sm:$0xf]
    %v79 = vld [vmem:[%s1 + $0xc4] sm:$0xf]
    %v80 = vld [vmem:[%s1 + $0xc8] sm:$0xf]
    %v81 = vld [vmem:[%s1 + $0xcc] sm:$0xf]
    %v82 = vld [vmem:[%s1 + $0xd0] sm:$0xf]
    %v83 = vld [vmem:[%s1 + $0xd4] sm:$0xf]
    %v84 = vld [vmem:[%s1 + $0xd8] sm:$0xf]
    %v85 = vld [vmem:[%s1 + $0xdc] sm:$0xf]
    %v86 = vld [vmem:[%s1 + $0xe0] sm:$0xf]
    %v87 = vld [vmem:[%s1 + $0xe4] sm:$0xf]
    %v88 = vld [vmem:[%s1 + $0xe8] sm:$0xf]
    %v89 = vld [vmem:[%s1 + $0xec] sm:$0xf]
    %v90 = vld [vmem:[%s1 + $0xf0] sm:$0xf]
    %v91 = vld [vmem:[%s1 + $0xf4] sm:$0xf]
    %v92 = vld [vmem:[%s1 + $0xf8] sm:$0xf]
    %v93 = vld [vmem:[%s1 + $0xfc] sm:$0xf]
    %v94 = vld [vmem:[%s1 + $0x100] sm:$0xf]
    %v95 = vld [vmem:[%s1 + $0x104] sm:$0xf]
    %v96 = vld [vmem:[%s1 + $0x108] sm:$0xf]
    %v97 = vld [vmem:[%s1 + $0x10c] sm:$0xf]
    %v98 = vld [vmem:[%s1 + $0x110] sm:$0xf]
    %v99 = vld [vmem:[%s1 + $0x114] sm:$0xf]
    %v100 = vld [vmem:[%s1 + $0x118] sm:$0xf]
    %v101 = vld [vmem:[%s1 + $0x11c] sm:$0xf]
    %v102 = vld [vmem:[%s1 + $0x120] sm:$0xf]
    %v103 = vld [vmem:[%s1 + $0x124] sm:$0xf]
    %v104 = vld [vmem:[%s1 + $0x128] sm:$0xf]
    %v105 = vld [vmem:[%s1 + $0x12c] sm:$0xf]
    %v106 = vld [vmem:[%s1 + $0x130] sm:$0xf]
    %v107 = vld [vmem:[%s1 + $0x134] sm:$0xf]
    %v108 = vld [vmem:[%s1 + $0x138] sm:$0xf]
    %v109 = vld [vmem:[%s1 + $0x13c] sm:$0xf]
    %v110 = vld [vmem:[%s1 + $0x140] sm:$0xf]
    %v111 = vld [vmem:[%s1 + $0x144] sm:$0xf]
    %v112 = vld [vmem:[%s1 + $0x148] sm:$0xf]
    %v113 = vld [vmem:[%s1 + $0x14c] sm:$0xf]
    %v114 = vld [vmem:[%s1 + $0x150] sm:$0xf]
    %v115 = vld [vmem:[%s1 + $0x154] sm:$0xf]
    %v116 = vld [vmem:[%s1 + $0x158] sm:$0xf]
    %v117 = vld [vmem:[%s1 + $0x15c] sm:$0xf]
    %v118 = vld [vmem:[%s1 + $0x160] sm:$0xf]
    %v119 = vld [vmem:[%s1 + $0x164] sm:$0xf]
    %v120 = vld [vmem:[%s1 + $0x168] sm:$0xf]
    %v121 = vld [vmem:[%s1 + $0x16c] sm:$0xf]
    %v122 = vld [vmem:[%s1 + $0x170] sm:$0xf]
    %v123 = vld [vmem:[%s1 + $0x174] sm:$0xf]
    %v124 = vld [vmem:[%s1 + $0x178] sm:$0xf]
    %v125 = vld [vmem:[%s1 + $0x17c] sm:$0xf]
    %v126 = vld [vmem:[%s1 + $0x180] sm:$0xf]
    %v127 = vld [vmem:[%s1 + $0x184] sm:$0xf]
    %v128 = vld [vmem:[%s1 + $0x188] sm:$0xf]
    %v129 = vld [vmem:[%s1 + $0x18c] sm:$0xf]
    %v130 = vld [vmem:[%s1 + $0x190] sm:$0xf]
    %v131 = vld [vmem:[%s1 + $0x194] sm:$0xf]
    %v132 = vld [vmem:[%s1 + $0x198] sm:$0xf]
    %v133 = vld [vmem:[%s1 + $0x19c] sm:$0xf]
    %v134 = vld [vmem:[%s1 + $0x1a0] sm:$0xf]
    %v135 = vld [vmem:[%s1 + $0x1a4] sm:$0xf]
    %v136 = vld [vmem:[%s1 + $0x1a8] sm:$0xf]
    %v137 = vld [vmem:[%s1 + $0x1ac] sm:$0xf]
    %v138 = vld [vmem:[%s1 + $0x1b0] sm:$0xf]
    %v139 = vld [vmem:[%s1 + $0x1b4] sm:$0xf]
    %v140 = vld [vmem:[%s1 + $0x1b8] sm:$0xf]
    %v141 = vld [vmem:[%s1 + $0x1bc] sm:$0xf]
    %v142 = vld [vmem:[%s1 + $0x1c0] sm:$0xf]
    %v143 = vld [vmem:[%s1 + $0x1c4] sm:$0xf]
    %v144 = vld [vmem:[%s1 + $0x1c8] sm:$0xf]
    %v145 = vld [vmem:[%s1 + $0x1cc] sm:$0xf]
    %v146 = vld [vmem:[%s1 + $0x1d0] sm:$0xf]
    %v147 = vld [vmem:[%s1 + $0x1d4] sm:$0xf]
    %v148 = vld [vmem:[%s1 + $0x1d8] sm:$0xf]
    %v149 = vld [vmem:[%s1 + $0x1dc] sm:$0xf]
    %v150 = vld [vmem:[%s1 + $0x1e0] sm:$0xf]
    %v151 = vld [vmem:[%s1 + $0x1e4] sm:$0xf]
    %v152 = vld [vmem:[%s1 + $0x1e8] sm:$0xf]
    %v153 = vld [vmem:[%s1 + $0x1ec] sm:$0xf]
    %v154 = vld [vmem:[%s1 + $0x1f0] sm:$0xf]
    %v155 = vld [vmem:[%s1 + $0x1f4] sm:$0xf]
    %v156 = vld [vmem:[%s1 + $0x1f8] sm:$0xf]
    %v157 = vld [vmem:[%s1 + $0x1fc] sm:$0xf]
    %v158 = vld [vmem:[%s2] sm:$0x1]
    %v160 = vlaneseq
    %v161 = vshrl.u32 %v160, 7
    %v162 = vsub.s32 0, %v161
    %v163 = vrot.slane %v158, %v162
    %v173 = vunpack.c.l.b16 %v22
    %v174 = vunpack.c.h.b16 %v22
    %v175 = vunpack.c.l.b16 %v23
    %v176 = vunpack.c.h.b16 %v23
    %v177 = vunpack.c.l.b16 %v24
    %v178 = vunpack.c.h.b16 %v24
    %v179 = vunpack.c.l.b16 %v25
    %v180 = vunpack.c.h.b16 %v25
    %v181 = vunpack.c.l.b16 %v26
    %v182 = vunpack.c.h.b16 %v26
    %v183 = vunpack.c.l.b16 %v27
    %v184 = vunpack.c.h.b16 %v27
    %v185 = vunpack.c.l.b16 %v28
    %v186 = vunpack.c.h.b16 %v28
    %v187 = vunpack.c.l.b16 %v29
    %v188 = vunpack.c.h.b16 %v29
    %v189 = vpack.c.b16 %v181, %v173
    %v190 = vpack.c.b16 %v182, %v174
    %v191 = vpack.c.b16 %v183, %v175
    %v192 = vpack.c.b16 %v184, %v176
    %v193 = vpack.c.b16 %v185, %v177
    %v194 = vpack.c.b16 %v186, %v178
    %v195 = vpack.c.b16 %v187, %v179
    %v196 = vpack.c.b16 %v188, %v180
    %v333 = vunpack.c.l.b16 %v30
    %v334 = vunpack.c.l.b16 %v31
    %v335 = vunpack.c.l.b16 %v32
    %v336 = vunpack.c.l.b16 %v33
    %v337 = vunpack.c.l.b16 %v34
    %v338 = vunpack.c.l.b16 %v35
    %v339 = vunpack.c.l.b16 %v36
    %v340 = vunpack.c.l.b16 %v37
    %v341 = vunpack.c.l.b16 %v38
    %v342 = vunpack.c.l.b16 %v39
    %v343 = vunpack.c.l.b16 %v40
    %v344 = vunpack.c.l.b16 %v41
    %v345 = vunpack.c.l.b16 %v42
    %v346 = vunpack.c.l.b16 %v43
    %v347 = vunpack.c.l.b16 %v44
    %v348 = vunpack.c.l.b16 %v45
    %v349 = vunpack.c.l.b16 %v46
    %v350 = vunpack.c.l.b16 %v47
    %v351 = vunpack.c.l.b16 %v48
    %v352 = vunpack.c.l.b16 %v49
    %v353 = vunpack.c.l.b16 %v50
    %v354 = vunpack.c.l.b16 %v51
    %v355 = vunpack.c.l.b16 %v52
    %v356 = vunpack.c.l.b16 %v53
    %v357 = vunpack.c.l.b16 %v54
    %v358 = vunpack.c.l.b16 %v55
    %v359 = vunpack.c.l.b16 %v56
    %v360 = vunpack.c.l.b16 %v57
    %v361 = vunpack.c.l.b16 %v58
    %v362 = vunpack.c.l.b16 %v59
    %v363 = vunpack.c.l.b16 %v60
    %v364 = vunpack.c.l.b16 %v61
    %v365 = vunpack.c.l.b16 %v62
    %v366 = vunpack.c.l.b16 %v63
    %v367 = vunpack.c.l.b16 %v64
    %v368 = vunpack.c.l.b16 %v65
    %v369 = vunpack.c.l.b16 %v66
    %v370 = vunpack.c.l.b16 %v67
    %v371 = vunpack.c.l.b16 %v68
    %v372 = vunpack.c.l.b16 %v69
    %v373 = vunpack.c.l.b16 %v70
    %v374 = vunpack.c.l.b16 %v71
    %v375 = vunpack.c.l.b16 %v72
    %v376 = vunpack.c.l.b16 %v73
    %v377 = vunpack.c.l.b16 %v74
    %v378 = vunpack.c.l.b16 %v75
    %v379 = vunpack.c.l.b16 %v76
    %v380 = vunpack.c.l.b16 %v77
    %v381 = vunpack.c.l.b16 %v78
    %v382 = vunpack.c.l.b16 %v79
    %v383 = vunpack.c.l.b16 %v80
    %v384 = vunpack.c.l.b16 %v81
    %v385 = vunpack.c.l.b16 %v82
    %v386 = vunpack.c.l.b16 %v83
    %v387 = vunpack.c.l.b16 %v84
    %v388 = vunpack.c.l.b16 %v85
    %v389 = vunpack.c.l.b16 %v86
    %v390 = vunpack.c.l.b16 %v87
    %v391 = vunpack.c.l.b16 %v88
    %v392 = vunpack.c.l.b16 %v89
    %v393 = vunpack.c.l.b16 %v90
    %v394 = vunpack.c.l.b16 %v91
    %v395 = vunpack.c.l.b16 %v92
    %v396 = vunpack.c.l.b16 %v93
    %v397 = vunpack.c.l.b16 %v94
    %v398 = vunpack.c.l.b16 %v95
    %v399 = vunpack.c.l.b16 %v96
    %v400 = vunpack.c.l.b16 %v97
    %v401 = vunpack.c.l.b16 %v98
    %v402 = vunpack.c.l.b16 %v99
    %v403 = vunpack.c.l.b16 %v100
    %v404 = vunpack.c.l.b16 %v101
    %v405 = vunpack.c.l.b16 %v102
    %v406 = vunpack.c.l.b16 %v103
    %v407 = vunpack.c.l.b16 %v104
    %v408 = vunpack.c.l.b16 %v105
    %v409 = vunpack.c.l.b16 %v106
    %v410 = vunpack.c.l.b16 %v107
    %v411 = vunpack.c.l.b16 %v108
    %v412 = vunpack.c.l.b16 %v109
    %v413 = vunpack.c.l.b16 %v110
    %v414 = vunpack.c.l.b16 %v111
    %v415 = vunpack.c.l.b16 %v112
    %v416 = vunpack.c.l.b16 %v113
    %v417 = vunpack.c.l.b16 %v114
    %v418 = vunpack.c.l.b16 %v115
    %v419 = vunpack.c.l.b16 %v116
    %v420 = vunpack.c.l.b16 %v117
    %v421 = vunpack.c.l.b16 %v118
    %v422 = vunpack.c.l.b16 %v119
    %v423 = vunpack.c.l.b16 %v120
    %v424 = vunpack.c.l.b16 %v121
    %v425 = vunpack.c.l.b16 %v122
    %v426 = vunpack.c.l.b16 %v123
    %v427 = vunpack.c.l.b16 %v124
    %v428 = vunpack.c.l.b16 %v125
    %v429 = vunpack.c.l.b16 %v126
    %v430 = vunpack.c.l.b16 %v127
    %v431 = vunpack.c.l.b16 %v128
    %v432 = vunpack.c.l.b16 %v129
    %v433 = vunpack.c.l.b16 %v130
    %v434 = vunpack.c.l.b16 %v131
    %v435 = vunpack.c.l.b16 %v132
    %v436 = vunpack.c.l.b16 %v133
    %v437 = vunpack.c.l.b16 %v134
    %v438 = vunpack.c.l.b16 %v135
    %v439 = vunpack.c.l.b16 %v136
    %v440 = vunpack.c.l.b16 %v137
    %v441 = vunpack.c.l.b16 %v138
    %v442 = vunpack.c.l.b16 %v139
    %v443 = vunpack.c.l.b16 %v140
    %v444 = vunpack.c.l.b16 %v141
    %v445 = vunpack.c.l.b16 %v142
    %v446 = vunpack.c.l.b16 %v143
    %v447 = vunpack.c.l.b16 %v144
    %v448 = vunpack.c.l.b16 %v145
    %v449 = vunpack.c.l.b16 %v146
    %v450 = vunpack.c.l.b16 %v147
    %v451 = vunpack.c.l.b16 %v148
    %v452 = vunpack.c.l.b16 %v149
    %v453 = vunpack.c.l.b16 %v150
    %v454 = vunpack.c.l.b16 %v151
    %v455 = vunpack.c.l.b16 %v152
    %v456 = vunpack.c.l.b16 %v153
    %v457 = vunpack.c.l.b16 %v154
    %v458 = vunpack.c.l.b16 %v155
    %v459 = vunpack.c.l.b16 %v156
    %v460 = vunpack.c.l.b16 %v157
    %v461 = vpack.c.b16 %v334, %v333
    %v462 = vpack.c.b16 %v336, %v335
    %v463 = vpack.c.b16 %v338, %v337
    %v464 = vpack.c.b16 %v340, %v339
    %v465 = vpack.c.b16 %v342, %v341
    %v466 = vpack.c.b16 %v344, %v343
    %v467 = vpack.c.b16 %v346, %v345
    %v468 = vpack.c.b16 %v348, %v347
    %v469 = vpack.c.b16 %v350, %v349
    %v470 = vpack.c.b16 %v352, %v351
    %v471 = vpack.c.b16 %v354, %v353
    %v472 = vpack.c.b16 %v356, %v355
    %v473 = vpack.c.b16 %v358, %v357
    %v474 = vpack.c.b16 %v360, %v359
    %v475 = vpack.c.b16 %v362, %v361
    %v476 = vpack.c.b16 %v364, %v363
    %v477 = vpack.c.b16 %v366, %v365
    %v478 = vpack.c.b16 %v368, %v367
    %v479 = vpack.c.b16 %v370, %v369
    %v480 = vpack.c.b16 %v372, %v371
    %v481 = vpack.c.b16 %v374, %v373
    %v482 = vpack.c.b16 %v376, %v375
    %v483 = vpack.c.b16 %v378, %v377
    %v484 = vpack.c.b16 %v380, %v379
    %v485 = vpack.c.b16 %v382, %v381
    %v486 = vpack.c.b16 %v384, %v383
    %v487 = vpack.c.b16 %v386, %v385
    %v488 = vpack.c.b16 %v388, %v387
    %v489 = vpack.c.b16 %v390, %v389
    %v490 = vpack.c.b16 %v392, %v391
    %v491 = vpack.c.b16 %v394, %v393
    %v492 = vpack.c.b16 %v396, %v395
    %v493 = vpack.c.b16 %v398, %v397
    %v494 = vpack.c.b16 %v400, %v399
    %v495 = vpack.c.b16 %v402, %v401
    %v496 = vpack.c.b16 %v404, %v403
    %v497 = vpack.c.b16 %v406, %v405
    %v498 = vpack.c.b16 %v408, %v407
    %v499 = vpack.c.b16 %v410, %v409
    %v500 = vpack.c.b16 %v412, %v411
    %v501 = vpack.c.b16 %v414, %v413
    %v502 = vpack.c.b16 %v416, %v415
    %v503 = vpack.c.b16 %v418, %v417
    %v504 = vpack.c.b16 %v420, %v419
    %v505 = vpack.c.b16 %v422, %v421
    %v506 = vpack.c.b16 %v424, %v423
    %v507 = vpack.c.b16 %v426, %v425
    %v508 = vpack.c.b16 %v428, %v427
    %v509 = vpack.c.b16 %v430, %v429
    %v510 = vpack.c.b16 %v432, %v431
    %v511 = vpack.c.b16 %v434, %v433
    %v512 = vpack.c.b16 %v436, %v435
    %v513 = vpack.c.b16 %v438, %v437
    %v514 = vpack.c.b16 %v440, %v439
    %v515 = vpack.c.b16 %v442, %v441
    %v516 = vpack.c.b16 %v444, %v443
    %v517 = vpack.c.b16 %v446, %v445
    %v518 = vpack.c.b16 %v448, %v447
    %v519 = vpack.c.b16 %v450, %v449
    %v520 = vpack.c.b16 %v452, %v451
    %v521 = vpack.c.b16 %v454, %v453
    %v522 = vpack.c.b16 %v456, %v455
    %v523 = vpack.c.b16 %v458, %v457
    %v524 = vpack.c.b16 %v460, %v459
    %589 = vmatprep.subr.bf16.mxu0 0
    %590 = vmatpush1.bf16.msra.mxu0 %v468
    %591 = vmatprep.subr.bf16.mxu0 0
    %592 = vmatpush1.bf16.msra.mxu0 %v467
    %593 = vmatprep.subr.bf16.mxu0 0
    %594 = vmatpush1.bf16.msra.mxu0 %v466
    %595 = vmatprep.subr.bf16.mxu0 0
    %596 = vmatpush1.bf16.msra.mxu0 %v465
    %597 = vmatprep.subr.bf16.mxu0 0
    %598 = vmatpush1.bf16.msra.mxu0 %v464
    %599 = vmatprep.subr.bf16.mxu0 0
    %600 = vmatpush1.bf16.msra.mxu0 %v463
    %601 = vmatprep.subr.bf16.mxu0 0
    %602 = vmatpush1.bf16.msra.mxu0 %v462
    %603 = vmatprep.subr.bf16.mxu0 0
    %604 = vmatpush1.bf16.msra.mxu0 %v461
    %605 = vmatprep.subr.bf16.mxu0 0
    %606 = vmatpush2.bf16.msra.mxu0 %v476
    %607 = vmatprep.subr.bf16.mxu0 0
    %608 = vmatpush2.bf16.msra.mxu0 %v475
    %609 = vmatprep.subr.bf16.mxu0 0
    %610 = vmatpush2.bf16.msra.mxu0 %v474
    %611 = vmatprep.subr.bf16.mxu0 0
    %612 = vmatpush2.bf16.msra.mxu0 %v473
    %613 = vmatprep.subr.bf16.mxu0 0
    %614 = vmatpush2.bf16.msra.mxu0 %v472
    %615 = vmatprep.subr.bf16.mxu0 0
    %616 = vmatpush2.bf16.msra.mxu0 %v471
    %617 = vmatprep.subr.bf16.mxu0 0
    %618 = vmatpush2.bf16.msra.mxu0 %v470
    %619 = vmatprep.subr.bf16.mxu0 0
    %620 = vmatpush2.bf16.msra.mxu0 %v469
    %621 = vmatprep.mubr.bf16.mxu0 %v190
    %622 = vmatmul.mubr.bf16.gmra.mxu0 %v189
    %v623 = vpop.f32.mrf.mxu0
    %v624 = vadd.f32 %v163, %v623
    %v625 = vpop.f32.mrf.mxu0
    %v626 = vpop.f32.mrf.mxu0
    %v627 = vadd.f32 %v163, %v626
    %v628 = vpop.f32.mrf.mxu0
    %629 = vdwg.mxu0
    %630 = vmatprep.subr.bf16.mxu0 0
    %631 = vmatpush1.bf16.msra.mxu0 %v484
    %632 = vmatprep.subr.bf16.mxu0 0
    %633 = vmatpush1.bf16.msra.mxu0 %v483
    %634 = vmatprep.subr.bf16.mxu0 0
    %635 = vmatpush1.bf16.msra.mxu0 %v482
    %636 = vmatprep.subr.bf16.mxu0 0
    %637 = vmatpush1.bf16.msra.mxu0 %v481
    %638 = vmatprep.subr.bf16.mxu0 0
    %639 = vmatpush1.bf16.msra.mxu0 %v480
    %640 = vmatprep.subr.bf16.mxu0 0
    %641 = vmatpush1.bf16.msra.mxu0 %v479
    %642 = vmatprep.subr.bf16.mxu0 0
    %643 = vmatpush1.bf16.msra.mxu0 %v478
    %644 = vmatprep.subr.bf16.mxu0 0
    %645 = vmatpush1.bf16.msra.mxu0 %v477
    %646 = vmatprep.subr.bf16.mxu0 0
    %647 = vmatpush2.bf16.msra.mxu0 %v492
    %648 = vmatprep.subr.bf16.mxu0 0
    %649 = vmatpush2.bf16.msra.mxu0 %v491
    %650 = vmatprep.subr.bf16.mxu0 0
    %651 = vmatpush2.bf16.msra.mxu0 %v490
    %652 = vmatprep.subr.bf16.mxu0 0
    %653 = vmatpush2.bf16.msra.mxu0 %v489
    %654 = vmatprep.subr.bf16.mxu0 0
    %655 = vmatpush2.bf16.msra.mxu0 %v488
    %656 = vmatprep.subr.bf16.mxu0 0
    %657 = vmatpush2.bf16.msra.mxu0 %v487
    %658 = vmatprep.subr.bf16.mxu0 0
    %659 = vmatpush2.bf16.msra.mxu0 %v486
    %660 = vmatprep.subr.bf16.mxu0 0
    %661 = vmatpush2.bf16.msra.mxu0 %v485
    %662 = vmatprep.mubr.bf16.mxu0 %v192
    %663 = vmatmul.mubr.bf16.gmra.mxu0 %v191
    %v664 = vpop.f32.mrf.mxu0
    %v665 = vadd.f32 %v624, %v664
    %v666 = vpop.f32.mrf.mxu0
    %v667 = vpop.f32.mrf.mxu0
    %v668 = vadd.f32 %v627, %v667
    %v669 = vpop.f32.mrf.mxu0
    %670 = vdwg.mxu0
    %671 = vmatprep.subr.bf16.mxu0 0
    %672 = vmatpush1.bf16.msra.mxu0 %v500
    %673 = vmatprep.subr.bf16.mxu0 0
    %674 = vmatpush1.bf16.msra.mxu0 %v499
    %675 = vmatprep.subr.bf16.mxu0 0
    %676 = vmatpush1.bf16.msra.mxu0 %v498
    %677 = vmatprep.subr.bf16.mxu0 0
    %678 = vmatpush1.bf16.msra.mxu0 %v497
    %679 = vmatprep.subr.bf16.mxu0 0
    %680 = vmatpush1.bf16.msra.mxu0 %v496
    %681 = vmatprep.subr.bf16.mxu0 0
    %682 = vmatpush1.bf16.msra.mxu0 %v495
    %683 = vmatprep.subr.bf16.mxu0 0
    %684 = vmatpush1.bf16.msra.mxu0 %v494
    %685 = vmatprep.subr.bf16.mxu0 0
    %686 = vmatpush1.bf16.msra.mxu0 %v493
    %687 = vmatprep.subr.bf16.mxu0 0
    %688 = vmatpush2.bf16.msra.mxu0 %v508
    %689 = vmatprep.subr.bf16.mxu0 0
    %690 = vmatpush2.bf16.msra.mxu0 %v507
    %691 = vmatprep.subr.bf16.mxu0 0
    %692 = vmatpush2.bf16.msra.mxu0 %v506
    %693 = vmatprep.subr.bf16.mxu0 0
    %694 = vmatpush2.bf16.msra.mxu0 %v505
    %695 = vmatprep.subr.bf16.mxu0 0
    %696 = vmatpush2.bf16.msra.mxu0 %v504
    %697 = vmatprep.subr.bf16.mxu0 0
    %698 = vmatpush2.bf16.msra.mxu0 %v503
    %699 = vmatprep.subr.bf16.mxu0 0
    %700 = vmatpush2.bf16.msra.mxu0 %v502
    %701 = vmatprep.subr.bf16.mxu0 0
    %702 = vmatpush2.bf16.msra.mxu0 %v501
    %703 = vmatprep.mubr.bf16.mxu0 %v194
    %704 = vmatmul.mubr.bf16.gmra.mxu0 %v193
    %v705 = vpop.f32.mrf.mxu0
    %v706 = vadd.f32 %v665, %v705
    %v707 = vpop.f32.mrf.mxu0
    %v708 = vpop.f32.mrf.mxu0
    %v709 = vadd.f32 %v668, %v708
    %v710 = vpop.f32.mrf.mxu0
    %711 = vdwg.mxu0
    %712 = vmatprep.subr.bf16.mxu0 0
    %713 = vmatpush1.bf16.msra.mxu0 %v516
    %714 = vmatprep.subr.bf16.mxu0 0
    %715 = vmatpush1.bf16.msra.mxu0 %v515
    %716 = vmatprep.subr.bf16.mxu0 0
    %717 = vmatpush1.bf16.msra.mxu0 %v514
    %718 = vmatprep.subr.bf16.mxu0 0
    %719 = vmatpush1.bf16.msra.mxu0 %v513
    %720 = vmatprep.subr.bf16.mxu0 0
    %721 = vmatpush1.bf16.msra.mxu0 %v512
    %722 = vmatprep.subr.bf16.mxu0 0
    %723 = vmatpush1.bf16.msra.mxu0 %v511
    %724 = vmatprep.subr.bf16.mxu0 0
    %725 = vmatpush1.bf16.msra.mxu0 %v510
    %726 = vmatprep.subr.bf16.mxu0 0
    %727 = vmatpush1.bf16.msra.mxu0 %v509
    %728 = vmatprep.subr.bf16.mxu0 0
    %729 = vmatpush2.bf16.msra.mxu0 %v524
    %730 = vmatprep.subr.bf16.mxu0 0
    %731 = vmatpush2.bf16.msra.mxu0 %v523
    %732 = vmatprep.subr.bf16.mxu0 0
    %733 = vmatpush2.bf16.msra.mxu0 %v522
    %734 = vmatprep.subr.bf16.mxu0 0
    %735 = vmatpush2.bf16.msra.mxu0 %v521
    %736 = vmatprep.subr.bf16.mxu0 0
    %737 = vmatpush2.bf16.msra.mxu0 %v520
    %738 = vmatprep.subr.bf16.mxu0 0
    %739 = vmatpush2.bf16.msra.mxu0 %v519
    %740 = vmatprep.subr.bf16.mxu0 0
    %741 = vmatpush2.bf16.msra.mxu0 %v518
    %742 = vmatprep.subr.bf16.mxu0 0
    %743 = vmatpush2.bf16.msra.mxu0 %v517
    %744 = vmatprep.mubr.bf16.mxu0 %v196
    %745 = vmatmul.mubr.bf16.gmra.mxu0 %v195
    %v746 = vpop.f32.mrf.mxu0
    %v747 = vadd.f32 %v706, %v746
    %v748 = vpop.f32.mrf.mxu0
    %v749 = vpop.f32.mrf.mxu0
    %v750 = vadd.f32 %v709, %v749
    %v751 = vpop.f32.mrf.mxu0
    %752 = vdwg.mxu0
    %v753 = vmax.f32 %v747, 0.0
    %v754 = vmax.f32 %v750, 0.0
    %v755 = vpack.c.bf16 %v754, %v753
    %v756 = vld [vmem:[%s3] sm:$0xf]
    %v757 = vld [vmem:[%s3 + $0x4] sm:$0xf]
    %v758 = vld [vmem:[%s3 + $0x8] sm:$0xf]
    %v759 = vld [vmem:[%s3 + $0xc] sm:$0xf]
    %v760 = vld [vmem:[%s4] sm:$0x1]
    %v762 = vlaneseq
    %v763 = vshrl.u32 %v762, 7
    %v764 = vsub.s32 0, %v763
    %v765 = vrot.slane %v760, %v764
    %v771 = vunpack.c.l.b16 %v756
    %v772 = vunpack.c.l.b16 %v757
    %v773 = vunpack.c.l.b16 %v758
    %v774 = vunpack.c.l.b16 %v759
    %v775 = vpack.c.b16 %v772, %v771
    %v776 = vpack.c.b16 %v774, %v773
    %vm779 = vcmask 261120
    %v781 = vsel %vm779, %v755, 0
    %783 = vmatprep.subr.bf16.mxu0 0
    %784 = vmatpush1.bf16.msra.mxu0 0
    %785 = vmatprep.subr.bf16.mxu0 0
    %786 = vmatpush1.bf16.msra.mxu0 0
    %787 = vmatprep.subr.bf16.mxu0 0
    %788 = vmatpush1.bf16.msra.mxu0 0
    %789 = vmatprep.subr.bf16.mxu0 0
    %790 = vmatpush1.bf16.msra.mxu0 0
    %791 = vmatprep.subr.bf16.mxu0 0
    %792 = vmatpush1.bf16.msra.mxu0 0
    %793 = vmatprep.subr.bf16.mxu0 0
    %794 = vmatpush1.bf16.msra.mxu0 0
    %795 = vmatprep.subr.bf16.mxu0 0
    %796 = vmatpush1.bf16.msra.mxu0 %v776
    %797 = vmatprep.subr.bf16.mxu0 0
    %798 = vmatpush1.bf16.msra.mxu0 %v775
    %799 = vmatprep.subr.bf16.mxu0 0
    %800 = vmatpush2.bf16.msra.mxu0 0
    %801 = vmatprep.subr.bf16.mxu0 0
    %802 = vmatpush2.bf16.msra.mxu0 0
    %803 = vmatprep.subr.bf16.mxu0 0
    %804 = vmatpush2.bf16.msra.mxu0 0
    %805 = vmatprep.subr.bf16.mxu0 0
    %806 = vmatpush2.bf16.msra.mxu0 0
    %807 = vmatprep.subr.bf16.mxu0 0
    %808 = vmatpush2.bf16.msra.mxu0 0
    %809 = vmatprep.subr.bf16.mxu0 0
    %810 = vmatpush2.bf16.msra.mxu0 0
    %811 = vmatprep.subr.bf16.mxu0 0
    %812 = vmatpush2.bf16.msra.mxu0 0
    %813 = vmatprep.subr.bf16.mxu0 0
    %814 = vmatpush2.bf16.msra.mxu0 0
    %815 = vmatprep.mubr.bf16.mxu0 0
    %816 = vmatmul.mubr.bf16.gmra.mxu0 %v781
    %v817 = vpop.f32.mrf.mxu0
    %v818 = vadd.f32 %v765, %v817
    %v819 = vpop.f32.mrf.mxu0
    %v820 = vpop.f32.mrf.mxu0
    %v821 = vadd.f32 %v765, %v820
    %v822 = vpop.f32.mrf.mxu0
    %823 = vdwg.mxu0
    %824 = vst [vmem:[#allocation2] sm:$0xff] %v818
    %825 = vst [vmem:[#allocation2 + $0x8] sm:$0xff] %v821
    // Predicated region
    $region22: #{tpu_custom_call.1} parent=1 // pred_check
      _
    $region23: #{tpu_custom_call.1} parent=1 // pred_check_branch
      %827 = sbr.rel (0) target = $region25
    $region24: #{tpu_custom_call.1} parent=1 // pred_region
      %s829 = ssub.s32 256, 256
      %830 = vsyncadd [#allocation3], %s829
      %s831 = sshll.u32 [#allocation2], 4
      %s832 = int_to_ptr.vmem [resolvable:$true] %s831
      %837 = dma.vmem_to_hbm [thread:$0]  %s832, 256, %s5, [#allocation3], 128, 128, 8
    $region25: #{tpu_custom_call.1} parent=1 // pred_fallthru
      _
    // Predicated region
    $region26: #{tpu_custom_call.1} parent=1 // pred_check
      _
    $region27: #{tpu_custom_call.1} parent=1 // pred_check_branch
      %839 = sbr.rel (0) target = $region29
    $region28: #{tpu_custom_call.1} parent=1 // pred_region
      %840 = dma.done [#allocation3], 256
    $region29: #{tpu_custom_call.1} parent=1 // pred_fallthru
      _
    %841 = vsyncpa [#allocation3], 1

</llo_original>
